<compile_context>
chip_gen: v7x
topology: tpu7x:2x2x1
jax: 0.10.0
libtpu: 0.0.40
codegen_flags: <defaults>
</compile_context>

<pallas_src>
import functools

import jax
import jax.numpy as jnp
from jax import lax
from jax.experimental import pallas as pl
from jax.experimental.pallas import tpu as pltpu


# ----------------------------------------------------------------------------
# Wrapper-side weight packing (ordinary JAX, done once per call / jit-cached).
# ----------------------------------------------------------------------------
def _pack_1x1_weight(w1, W):
    """w1: (Cin, Cmid) -> block-diagonal (W*Cin, W*Cmid).

    Packed rows (lane = w*Cin + ci) times this matrix give lanes (w*Cmid + cm),
    i.e. a per-pixel 1x1 convolution as a single lane-packed matmul.
    """
    eye = jnp.eye(W, dtype=w1.dtype)
    return jnp.einsum("uw,io->uiwo", eye, w1).reshape(W * w1.shape[0],
                                                      W * w1.shape[1])


def _pack_3x3_weight(w2, W):
    """w2: (3, 3, Cmid, Cout) HWIO -> (3*W*Cmid, W*Cout).

    The ky-th (W*Cmid, W*Cout) slab is block-tridiagonal with block (u, w) =
    w2[ky, u-w+1] for |u-w| <= 1 and zero otherwise.  This folds the three
    kx taps and the W-direction zero padding into the weight, so the kernel
    only needs H-direction row shifts.
    """
    _, _, cmid, cout = w2.shape
    u = jnp.arange(W)[:, None]
    w = jnp.arange(W)[None, :]
    d = u - w                                   # (W, W)
    sel = jnp.abs(d) <= 1
    idx = jnp.clip(d + 1, 0, 2)
    slabs = []
    for ky in range(3):
        blocks = w2[ky][idx]                    # (W, W, Cmid, Cout)
        blocks = jnp.where(sel[:, :, None, None], blocks, 0.0)
        slabs.append(jnp.transpose(blocks, (0, 2, 1, 3))
                     .reshape(W * cmid, W * cout))
    return jnp.concatenate(slabs, axis=0)


# ----------------------------------------------------------------------------
# Kernel
# ----------------------------------------------------------------------------
def _bottleneck_kernel(x_ref, w1_ref, s1_ref, b1_ref, w2_ref, s2_ref, b2_ref,
                       o_ref, *, H, add):
    """One batch-block per grid step, fully lane-packed.

    x_ref : (R, W*Cin)        rows = (image, h), lanes = (w, cin)      f32
    w1_ref: (W*Cin, W*Cmid)   block-diagonal 1x1-conv weight           bf16
    s1/b1 : (1, W*Cmid)       folded BN scale / bias (tiled over w)    f32
    w2_ref: (3*W*Cmid, W*Cout) block-tridiagonal 3x3-conv weight       bf16
    s2/b2 : (1, W*Cout)                                                f32
    o_ref : (R, W*Cout)
    """
    x = x_ref[...]                                           # f32

    # --- conv1 (1x1) + folded BN + SiLU: one MXU matmul, f32 epilogue.
    y = jnp.dot(x.astype(jnp.bfloat16), w1_ref[...],
                preferred_element_type=jnp.float32)          # (R, W*Cmid)
    y = y * s1_ref[...] + b1_ref[...]
    y = y * jax.nn.sigmoid(y)                                # SiLU (EUP)

    # --- conv2 (3x3, pad=1): three H-taps as row rolls + masks, W-taps and
    #     W padding folded into the block-tridiagonal weight.  The row mask
    #     provides H zero-padding and isolates images packed along rows.
    h_idx = lax.broadcasted_iota(jnp.int32, y.shape, 0) % H
    taps = []
    for dy in (-1, 0, 1):
        if dy == 0:
            taps.append(y)
        else:
            t = jnp.roll(y, -dy, axis=0)
            valid = (h_idx + dy >= 0) & (h_idx + dy < H)
            taps.append(jnp.where(valid, t, jnp.zeros_like(t)))
    patches = jnp.concatenate(taps, axis=1).astype(jnp.bfloat16)  # (R, 3*W*Cmid)

    z = jnp.dot(patches, w2_ref[...],
                preferred_element_type=jnp.float32)          # (R, W*Cout)
    z = z * s2_ref[...] + b2_ref[...]
    z = z * jax.nn.sigmoid(z)

    if add:                                                  # residual in f32
        z = z + x

    o_ref[...] = z.astype(o_ref.dtype)


# ----------------------------------------------------------------------------
# Wrapper
# ----------------------------------------------------------------------------
def bottleneck_pallas(x_nhwc, params, *, add, batch_block=8):
    N, H, W, Cin = x_nhwc.shape
    cmid = params["w1"].shape[-1]
    cout = params["w2"].shape[-1]
    if add and Cin != cout:
        raise ValueError("shortcut add requires Cin == Cout")

    # Block several images per grid step so per-step pipeline overhead is
    # amortized and the matmul M-dimension is larger.
    nb = min(batch_block, N)
    while N % nb:
        nb -= 1
    rows = nb * H

    # Lane-packed 2-D views: rows = (n, h), lanes = (w, c).  Pure reshapes.
    x2d = x_nhwc.reshape(N * H, W * Cin)

    # Packed weights as bf16 MXU operands; BN scale/bias stay f32.
    w1p = _pack_1x1_weight(params["w1"], W).astype(jnp.bfloat16)
    w2p = _pack_3x3_weight(params["w2"], W).astype(jnp.bfloat16)
    s1t = jnp.tile(params["s1"], W).reshape(1, W * cmid).astype(jnp.float32)
    b1t = jnp.tile(params["b1"], W).reshape(1, W * cmid).astype(jnp.float32)
    s2t = jnp.tile(params["s2"], W).reshape(1, W * cout).astype(jnp.float32)
    b2t = jnp.tile(params["b2"], W).reshape(1, W * cout).astype(jnp.float32)

    kernel = functools.partial(_bottleneck_kernel, H=H, add=add)

    out2d = pl.pallas_call(
        kernel,
        out_shape=jax.ShapeDtypeStruct((N * H, W * cout), x_nhwc.dtype),
        grid=(N // nb,),
        in_specs=[
            pl.BlockSpec((rows, W * Cin), lambda i: (i, 0)),
            pl.BlockSpec((W * Cin, W * cmid), lambda i: (0, 0)),
            pl.BlockSpec((1, W * cmid), lambda i: (0, 0)),
            pl.BlockSpec((1, W * cmid), lambda i: (0, 0)),
            pl.BlockSpec((3 * W * cmid, W * cout), lambda i: (0, 0)),
            pl.BlockSpec((1, W * cout), lambda i: (0, 0)),
            pl.BlockSpec((1, W * cout), lambda i: (0, 0)),
        ],
        out_specs=pl.BlockSpec((rows, W * cout), lambda i: (i, 0)),
        compiler_params=pltpu.CompilerParams(
            dimension_semantics=("parallel",)),
    )(x2d, w1p, s1t, b1t, w2p, s2t, b2t)

    return out2d.reshape(N, H, W, cout)


# ----------------------------------------------------------------------------
# Params + reference
# ----------------------------------------------------------------------------
def init_bottleneck_params(key, inp, oup, e=0.5, eps=1e-5):
    """Deterministic synthetic params.  BatchNorm (eval mode, running stats)
    is folded to per-channel scale/bias: s = gamma/sqrt(var+eps), b = beta-m*s.
    Conv weights are stored as (I, O) for the 1x1 and HWIO for the 3x3
    (equivalent to PyTorch's (O, I, kh, kw) after transpose)."""
    cmid = int(oup * e)
    ks = jax.random.split(key, 10)
    w1 = 0.2 * jax.random.normal(ks[0], (inp, cmid), jnp.float32)
    w2 = 0.2 * jax.random.normal(ks[1], (3, 3, cmid, oup), jnp.float32)
    g1 = 1.0 + 0.1 * jax.random.normal(ks[2], (cmid,), jnp.float32)
    b1 = 0.1 * jax.random.normal(ks[3], (cmid,), jnp.float32)
    m1 = 0.1 * jax.random.normal(ks[4], (cmid,), jnp.float32)
    v1 = jnp.abs(1.0 + 0.1 * jax.random.normal(ks[5], (cmid,), jnp.float32))
    g2 = 1.0 + 0.1 * jax.random.normal(ks[6], (oup,), jnp.float32)
    b2 = 0.1 * jax.random.normal(ks[7], (oup,), jnp.float32)
    m2 = 0.1 * jax.random.normal(ks[8], (oup,), jnp.float32)
    v2 = jnp.abs(1.0 + 0.1 * jax.random.normal(ks[9], (oup,), jnp.float32))

    s1 = g1 / jnp.sqrt(v1 + eps)
    s2 = g2 / jnp.sqrt(v2 + eps)
    return dict(w1=w1, w2=w2, s1=s1, b1=b1 - m1 * s1, s2=s2, b2=b2 - m2 * s2)


def bottleneck_ref(x_nhwc, p, *, add):
    """Pure-JAX reference (lax conv) mirroring the kernel's bf16 matmul
    operands / f32 accumulation so the comparison is apples-to-apples."""
    f32 = jnp.float32
    xb = x_nhwc.astype(jnp.bfloat16)
    y = jnp.einsum("nhwc,cd->nhwd", xb, p["w1"].astype(jnp.bfloat16),
                   preferred_element_type=f32)
    y = y * p["s1"] + p["b1"]
    y = y * jax.nn.sigmoid(y)
    z = lax.conv_general_dilated(
        y.astype(jnp.bfloat16), p["w2"].astype(jnp.bfloat16),
        window_strides=(1, 1), padding="SAME",
        dimension_numbers=("NHWC", "HWIO", "NHWC"),
        preferred_element_type=f32)
    z = z * p["s2"] + p["b2"]
    z = z * jax.nn.sigmoid(z)
    return x_nhwc + z if add else z


if __name__ == "__main__":
    # Bottleneck(inp=8, oup=8, e=0.5): conv1 8->4, conv2 4->8, shortcut active.
    N, Cin, H, W = 2, 8, 16, 16
    oup = 8
    shortcut = True
    add = shortcut and (Cin == oup)

    key = jax.random.PRNGKey(0)
    kx, kp = jax.random.split(key)
    x_nchw = jax.random.normal(kx, (N, Cin, H, W), jnp.float32)  # PyTorch NCHW
    x_nhwc = jnp.transpose(x_nchw, (0, 2, 3, 1))                 # kernel layout

    params = init_bottleneck_params(kp, Cin, oup, e=0.5)

    out_nhwc = jax.block_until_ready(bottleneck_pallas(x_nhwc, params, add=add))
    ref = bottleneck_ref(x_nhwc, params, add=add)

    assert out_nhwc.shape == (N, H, W, oup)
    max_err = float(jnp.max(jnp.abs(out_nhwc - ref)))
    # bf16 matmul operands in both kernel and reference -> tight f32-accum match.
    assert jnp.allclose(out_nhwc, ref, atol=5e-3, rtol=5e-3), max_err

    # Back to PyTorch's NCHW convention if needed downstream.
    out_nchw = jnp.transpose(out_nhwc, (0, 3, 1, 2))
    assert out_nchw.shape == (N, oup, H, W)

    print("KERNEL_OK")
</pallas_src>

<mosaic_0001>
module attributes {stable_mosaic.version = 11 : i64} {
  func.func @_bottleneck_kernel(%arg0: i32, %arg1: memref<32x128xf32, #tpu.memory_space<vmem>>, %arg2: memref<128x64xbf16, #tpu.memory_space<vmem>>, %arg3: memref<1x64xf32, #tpu.memory_space<vmem>>, %arg4: memref<1x64xf32, #tpu.memory_space<vmem>>, %arg5: memref<192x128xbf16, #tpu.memory_space<vmem>>, %arg6: memref<1x128xf32, #tpu.memory_space<vmem>>, %arg7: memref<1x128xf32, #tpu.memory_space<vmem>>, %arg8: memref<32x128xf32, #tpu.memory_space<vmem>>) attributes {dimension_semantics = [#tpu.dimension_semantics<parallel>], iteration_bounds = array<i64: 1>, scalar_prefetch = 0 : i64, scratch_operands = 0 : i64, tpu.core_type = #tpu.core_type<tc>, window_params = [{transform_indices = @transform_0, window_bounds = array<i64: 32, 128>}, {pipeline_mode = #tpu.pipeline_mode<synchronous>, transform_indices = @transform_1, window_bounds = array<i64: 128, 64>}, {pipeline_mode = #tpu.pipeline_mode<synchronous>, transform_indices = @transform_2, window_bounds = array<i64: 1, 64>}, {pipeline_mode = #tpu.pipeline_mode<synchronous>, transform_indices = @transform_3, window_bounds = array<i64: 1, 64>}, {pipeline_mode = #tpu.pipeline_mode<synchronous>, transform_indices = @transform_4, window_bounds = array<i64: 192, 128>}, {pipeline_mode = #tpu.pipeline_mode<synchronous>, transform_indices = @transform_5, window_bounds = array<i64: 1, 128>}, {pipeline_mode = #tpu.pipeline_mode<synchronous>, transform_indices = @transform_6, window_bounds = array<i64: 1, 128>}, {transform_indices = @transform_7, window_bounds = array<i64: 32, 128>}]} {
    %c0 = arith.constant 0 : index
    %c0_0 = arith.constant 0 : index
    %0 = vector.load %arg1[%c0, %c0_0] : memref<32x128xf32, #tpu.memory_space<vmem>>, vector<32x128xf32>
    %1 = arith.truncf %0 : vector<32x128xf32> to vector<32x128xbf16>
    %c0_1 = arith.constant 0 : index
    %c0_2 = arith.constant 0 : index
    %2 = vector.load %arg2[%c0_1, %c0_2] : memref<128x64xbf16, #tpu.memory_space<vmem>>, vector<128x64xbf16>
    %cst = arith.constant dense<0.000000e+00> : vector<32x64xf32>
    %3 = tpu.matmul %1, %2, %cst {dimension_numbers = #tpu.dot_dimension_numbers<[1], [0], [0], [1], [0, 0, 1, 1], [], []>} : vector<32x128xbf16>, vector<128x64xbf16>, vector<32x64xf32> -> vector<32x64xf32>
    %c0_3 = arith.constant 0 : index
    %c0_4 = arith.constant 0 : index
    %4 = vector.load %arg3[%c0_3, %c0_4] : memref<1x64xf32, #tpu.memory_space<vmem>>, vector<1x64xf32>
    %5 = vector.broadcast %4 : vector<1x64xf32> to vector<32x64xf32>
    %6 = arith.mulf %3, %5 : vector<32x64xf32>
    %c0_5 = arith.constant 0 : index
    %c0_6 = arith.constant 0 : index
    %7 = vector.load %arg4[%c0_5, %c0_6] : memref<1x64xf32, #tpu.memory_space<vmem>>, vector<1x64xf32>
    %8 = vector.broadcast %7 : vector<1x64xf32> to vector<32x64xf32>
    %9 = arith.addf %6, %8 : vector<32x64xf32>
    %10 = arith.negf %9 : vector<32x64xf32>
    %11 = math.exp %10 : vector<32x64xf32>
    %cst_7 = arith.constant 1.000000e+00 : f32
    %12 = vector.broadcast %cst_7 : f32 to vector<32x64xf32>
    %13 = arith.addf %12, %11 : vector<32x64xf32>
    %14 = arith.divf %12, %13 : vector<32x64xf32>
    %15 = arith.mulf %9, %14 : vector<32x64xf32>
    %16 = tpu.iota {dimensions = array<i32: 0>} : vector<32x64xi32>
    %c16_i32 = arith.constant 16 : i32
    %c0_i32 = arith.constant 0 : i32
    %17 = arith.cmpi eq, %c16_i32, %c0_i32 : i32
    %c1_i32 = arith.constant 1 : i32
    %18 = arith.select %17, %c1_i32, %c16_i32 : i32
    %19 = vector.broadcast %18 : i32 to vector<32x64xi32>
    %20 = arith.remsi %16, %19 : vector<32x64xi32>
    %c0_i32_8 = arith.constant 0 : i32
    %21 = vector.broadcast %c0_i32_8 : i32 to vector<32x64xi32>
    %22 = arith.cmpi ne, %20, %21 : vector<32x64xi32>
    %c0_i32_9 = arith.constant 0 : i32
    %23 = vector.broadcast %c0_i32_9 : i32 to vector<32x64xi32>
    %24 = arith.cmpi slt, %20, %23 : vector<32x64xi32>
    %c0_i32_10 = arith.constant 0 : i32
    %25 = arith.cmpi slt, %18, %c0_i32_10 : i32
    %26 = vector.broadcast %25 : i1 to vector<32x64xi1>
    %27 = vector.broadcast %26 : vector<32x64xi1> to vector<32x64xi1>
    %28 = arith.xori %24, %27 : vector<32x64xi1>
    %29 = arith.andi %28, %22 : vector<32x64xi1>
    %30 = vector.broadcast %18 : i32 to vector<32x64xi32>
    %31 = arith.addi %20, %30 : vector<32x64xi32>
    %32 = arith.select %29, %31, %20 : vector<32x64xi1>, vector<32x64xi32>
    %33 = vector.extract_strided_slice %15 {offsets = [31, 0], sizes = [1, 64], strides = [1, 1]} : vector<32x64xf32> to vector<1x64xf32>
    %34 = vector.extract_strided_slice %15 {offsets = [0, 0], sizes = [31, 64], strides = [1, 1]} : vector<32x64xf32> to vector<31x64xf32>
    %35 = tpu.concatenate %33, %34 in 0 : vector<1x64xf32>, vector<31x64xf32> -> vector<32x64xf32>
    %c-1_i32 = arith.constant -1 : i32
    %36 = vector.broadcast %c-1_i32 : i32 to vector<32x64xi32>
    %37 = arith.addi %32, %36 : vector<32x64xi32>
    %c0_i32_11 = arith.constant 0 : i32
    %38 = vector.broadcast %c0_i32_11 : i32 to vector<32x64xi32>
    %39 = arith.cmpi sge, %37, %38 : vector<32x64xi32>
    %c-1_i32_12 = arith.constant -1 : i32
    %40 = vector.broadcast %c-1_i32_12 : i32 to vector<32x64xi32>
    %41 = arith.addi %32, %40 : vector<32x64xi32>
    %c16_i32_13 = arith.constant 16 : i32
    %42 = vector.broadcast %c16_i32_13 : i32 to vector<32x64xi32>
    %43 = arith.cmpi slt, %41, %42 : vector<32x64xi32>
    %44 = arith.andi %39, %43 : vector<32x64xi1>
    %cst_14 = arith.constant 0.000000e+00 : f32
    %45 = vector.broadcast %cst_14 : f32 to vector<32x64xf32>
    %46 = arith.select %44, %35, %45 : vector<32x64xi1>, vector<32x64xf32>
    %47 = vector.extract_strided_slice %15 {offsets = [1, 0], sizes = [31, 64], strides = [1, 1]} : vector<32x64xf32> to vector<31x64xf32>
    %48 = vector.extract_strided_slice %15 {offsets = [0, 0], sizes = [1, 64], strides = [1, 1]} : vector<32x64xf32> to vector<1x64xf32>
    %49 = tpu.concatenate %47, %48 in 0 : vector<31x64xf32>, vector<1x64xf32> -> vector<32x64xf32>
    %c1_i32_15 = arith.constant 1 : i32
    %50 = vector.broadcast %c1_i32_15 : i32 to vector<32x64xi32>
    %51 = arith.addi %32, %50 : vector<32x64xi32>
    %c0_i32_16 = arith.constant 0 : i32
    %52 = vector.broadcast %c0_i32_16 : i32 to vector<32x64xi32>
    %53 = arith.cmpi sge, %51, %52 : vector<32x64xi32>
    %c1_i32_17 = arith.constant 1 : i32
    %54 = vector.broadcast %c1_i32_17 : i32 to vector<32x64xi32>
    %55 = arith.addi %32, %54 : vector<32x64xi32>
    %c16_i32_18 = arith.constant 16 : i32
    %56 = vector.broadcast %c16_i32_18 : i32 to vector<32x64xi32>
    %57 = arith.cmpi slt, %55, %56 : vector<32x64xi32>
    %58 = arith.andi %53, %57 : vector<32x64xi1>
    %cst_19 = arith.constant 0.000000e+00 : f32
    %59 = vector.broadcast %cst_19 : f32 to vector<32x64xf32>
    %60 = arith.select %58, %49, %59 : vector<32x64xi1>, vector<32x64xf32>
    %61 = tpu.concatenate %46, %15, %60 in 1 : vector<32x64xf32>, vector<32x64xf32>, vector<32x64xf32> -> vector<32x192xf32>
    %62 = arith.truncf %61 : vector<32x192xf32> to vector<32x192xbf16>
    %c0_20 = arith.constant 0 : index
    %c0_21 = arith.constant 0 : index
    %63 = vector.load %arg5[%c0_20, %c0_21] : memref<192x128xbf16, #tpu.memory_space<vmem>>, vector<192x128xbf16>
    %cst_22 = arith.constant dense<0.000000e+00> : vector<32x128xf32>
    %64 = tpu.matmul %62, %63, %cst_22 {dimension_numbers = #tpu.dot_dimension_numbers<[1], [0], [0], [1], [0, 0, 1, 1], [], []>} : vector<32x192xbf16>, vector<192x128xbf16>, vector<32x128xf32> -> vector<32x128xf32>
    %c0_23 = arith.constant 0 : index
    %c0_24 = arith.constant 0 : index
    %65 = vector.load %arg6[%c0_23, %c0_24] : memref<1x128xf32, #tpu.memory_space<vmem>>, vector<1x128xf32>
    %66 = vector.broadcast %65 : vector<1x128xf32> to vector<32x128xf32>
    %67 = arith.mulf %64, %66 : vector<32x128xf32>
    %c0_25 = arith.constant 0 : index
    %c0_26 = arith.constant 0 : index
    %68 = vector.load %arg7[%c0_25, %c0_26] : memref<1x128xf32, #tpu.memory_space<vmem>>, vector<1x128xf32>
    %69 = vector.broadcast %68 : vector<1x128xf32> to vector<32x128xf32>
    %70 = arith.addf %67, %69 : vector<32x128xf32>
    %71 = arith.negf %70 : vector<32x128xf32>
    %72 = math.exp %71 : vector<32x128xf32>
    %cst_27 = arith.constant 1.000000e+00 : f32
    %73 = vector.broadcast %cst_27 : f32 to vector<32x128xf32>
    %74 = arith.addf %73, %72 : vector<32x128xf32>
    %75 = arith.divf %73, %74 : vector<32x128xf32>
    %76 = arith.mulf %70, %75 : vector<32x128xf32>
    %77 = arith.addf %76, %0 : vector<32x128xf32>
    %c0_28 = arith.constant 0 : index
    %c0_29 = arith.constant 0 : index
    %78 = vector.load %arg8[%c0_28, %c0_29] : memref<32x128xf32, #tpu.memory_space<vmem>>, vector<32x128xf32>
    tpu.vector_store %arg8[%c0_28, %c0_29], %77 {strides = array<i32>} : memref<32x128xf32, #tpu.memory_space<vmem>>, vector<32x128xf32>,
    return
  }
  func.func @transform_0(%arg0: i32) -> (i32, i32) {
    %c0_i32 = arith.constant 0 : i32
    %c0_i32_0 = arith.constant 0 : i32
    return %arg0, %c0_i32 : i32, i32
  }
  func.func @transform_1(%arg0: i32) -> (i32, i32) {
    %c0_i32 = arith.constant 0 : i32
    %c0_i32_0 = arith.constant 0 : i32
    %c0_i32_1 = arith.constant 0 : i32
    return %c0_i32, %c0_i32_0 : i32, i32
  }
  func.func @transform_2(%arg0: i32) -> (i32, i32) {
    %c0_i32 = arith.constant 0 : i32
    %c0_i32_0 = arith.constant 0 : i32
    %c0_i32_1 = arith.constant 0 : i32
    return %c0_i32, %c0_i32_0 : i32, i32
  }
  func.func @transform_3(%arg0: i32) -> (i32, i32) {
    %c0_i32 = arith.constant 0 : i32
    %c0_i32_0 = arith.constant 0 : i32
    %c0_i32_1 = arith.constant 0 : i32
    return %c0_i32, %c0_i32_0 : i32, i32
  }
  func.func @transform_4(%arg0: i32) -> (i32, i32) {
    %c0_i32 = arith.constant 0 : i32
    %c0_i32_0 = arith.constant 0 : i32
    %c0_i32_1 = arith.constant 0 : i32
    return %c0_i32, %c0_i32_0 : i32, i32
  }
  func.func @transform_5(%arg0: i32) -> (i32, i32) {
    %c0_i32 = arith.constant 0 : i32
    %c0_i32_0 = arith.constant 0 : i32
    %c0_i32_1 = arith.constant 0 : i32
    return %c0_i32, %c0_i32_0 : i32, i32
  }
  func.func @transform_6(%arg0: i32) -> (i32, i32) {
    %c0_i32 = arith.constant 0 : i32
    %c0_i32_0 = arith.constant 0 : i32
    %c0_i32_1 = arith.constant 0 : i32
    return %c0_i32, %c0_i32_0 : i32, i32
  }
  func.func @transform_7(%arg0: i32) -> (i32, i32) {
    %c0_i32 = arith.constant 0 : i32
    %c0_i32_0 = arith.constant 0 : i32
    return %arg0, %c0_i32 : i32, i32
  }
}

</mosaic_0001>

<llo_original>
// kernel: tpu_custom_call.1
$region0: #{tpu_custom_call.1}
  #allocation0 [shape = 'u32[]', space=smem, size = 0x4, offset = 0x4, fixed_abs, tag = 'smem constant byte address 0x4 - core index']
  #allocation1 [shape = 'u32[144,128]{1,0:T(1,128)}', space=vmem, size = 0x12000, scoped, tag = 'internal scratch']
  %s0 = inlined_call_operand.hbm [shape: f32[32,128], index: 0, kind: input, shape index: {}]
  %s1 = inlined_call_operand.vmem [shape: bf16[128,64], index: 1, kind: input, shape index: {}]
  %s2 = inlined_call_operand.vmem [shape: f32[1,64], index: 2, kind: input, shape index: {}]
  %s3 = inlined_call_operand.vmem [shape: f32[1,64], index: 3, kind: input, shape index: {}]
  %s4 = inlined_call_operand.vmem [shape: bf16[192,128], index: 4, kind: input, shape index: {}]
  %s5 = inlined_call_operand.vmem [shape: f32[1,128], index: 5, kind: input, shape index: {}]
  %s6 = inlined_call_operand.vmem [shape: f32[1,128], index: 6, kind: input, shape index: {}]
  %s7 = inlined_call_operand.hbm [shape: f32[32,128], index: 7, kind: output, shape index: {}]
  %s8 = sld [smem:[#allocation0]]
  $region42: #{tpu_custom_call.1} parent=0
    _
  %s10 = ssub.s32 1, %s8
  %s11 = scalar_select 0, %s10, %s8
  $region1: #{tpu_custom_call.1} parent=0
    #allocation2 [shape = 'u8[16384]{0}', space=vmem, size = 0x4000, scoped, tag = 'input window, operand 0, single buffered']
    #allocation3 [shape = 's32[1]{0}', space=sflag, size = 0x4, scoped, tag = 'scoped memory for tpu_custom_call.1']
    #allocation4 [shape = 's32[1]{0}', space=sflag, size = 0x4, scoped, tag = 'scoped memory for tpu_custom_call.1']
    #allocation5 [shape = 'u8[16384]{0}', space=vmem, size = 0x4000, scoped, tag = 'output window, operand 0, single buffered']
    %12 = vsyncpa [#allocation3], 0
    %13 = vsyncpa [#allocation4], 0
    // Predicated region
    $region2: #{tpu_custom_call.1} parent=1 // pred_check
      _
    $region3: #{tpu_custom_call.1} parent=1 // pred_check_branch
      %15 = sbr.rel (0) target = $region5
    $region4: #{tpu_custom_call.1} parent=1 // pred_region
      %s17 = ssub.s32 512, 512
      %18 = vsyncadd [#allocation3], %s17
      %s19 = sshll.u32 [#allocation2], 4
      %s20 = int_to_ptr.vmem [resolvable:$true] %s19
      %25 = dma.hbm_to_vmem [thread:$0]  %s0, 512, %s20, [#allocation3], 128, 128, 8
    $region5: #{tpu_custom_call.1} parent=1 // pred_fallthru
      _
    // Predicated region
    $region6: #{tpu_custom_call.1} parent=1 // pred_check
      _
    $region7: #{tpu_custom_call.1} parent=1 // pred_check_branch
      %27 = sbr.rel (0) target = $region9
    $region8: #{tpu_custom_call.1} parent=1 // pred_region
      _
    $region9: #{tpu_custom_call.1} parent=1 // pred_fallthru
      _
    // Predicated region
    $region10: #{tpu_custom_call.1} parent=1 // pred_check
      _
    $region11: #{tpu_custom_call.1} parent=1 // pred_check_branch
      %29 = sbr.rel (0) target = $region13
    $region12: #{tpu_custom_call.1} parent=1 // pred_region
      _
    $region13: #{tpu_custom_call.1} parent=1 // pred_fallthru
      _
    // Predicated region
    $region14: #{tpu_custom_call.1} parent=1 // pred_check
      _
    $region15: #{tpu_custom_call.1} parent=1 // pred_check_branch
      %31 = sbr.rel (0) target = $region17
    $region16: #{tpu_custom_call.1} parent=1 // pred_region
      _
    $region17: #{tpu_custom_call.1} parent=1 // pred_fallthru
      _
    // Predicated region
    $region18: #{tpu_custom_call.1} parent=1 // pred_check
      _
    $region19: #{tpu_custom_call.1} parent=1 // pred_check_branch
      %33 = sbr.rel (0) target = $region21
    $region20: #{tpu_custom_call.1} parent=1 // pred_region
      _
    $region21: #{tpu_custom_call.1} parent=1 // pred_fallthru
      _
    // Predicated region
    $region22: #{tpu_custom_call.1} parent=1 // pred_check
      _
    $region23: #{tpu_custom_call.1} parent=1 // pred_check_branch
      %35 = sbr.rel (0) target = $region25
    $region24: #{tpu_custom_call.1} parent=1 // pred_region
      _
    $region25: #{tpu_custom_call.1} parent=1 // pred_fallthru
      _
    // Predicated region
    $region26: #{tpu_custom_call.1} parent=1 // pred_check
      _
    $region27: #{tpu_custom_call.1} parent=1 // pred_check_branch
      %37 = sbr.rel (0) target = $region29
    $region28: #{tpu_custom_call.1} parent=1 // pred_region
      _
    $region29: #{tpu_custom_call.1} parent=1 // pred_fallthru
      _
    // Predicated region
    $region30: #{tpu_custom_call.1} parent=1 // pred_check
      _
    $region31: #{tpu_custom_call.1} parent=1 // pred_check_branch
      %39 = sbr.rel (0) target = $region33
    $region32: #{tpu_custom_call.1} parent=1 // pred_region
      %40 = dma.done [#allocation3], 512
    $region33: #{tpu_custom_call.1} parent=1 // pred_fallthru
      _
    %v42 = vld [vmem:[#allocation2] sm:$0xff]
    %v43 = vld [vmem:[#allocation2 + $0x8] sm:$0xff]
    %v44 = vld [vmem:[#allocation2 + $0x10] sm:$0xff]
    %v45 = vld [vmem:[#allocation2 + $0x18] sm:$0xff]
    %v46 = vpack.c.bf16 %v43, %v42
    %v47 = vpack.c.bf16 %v45, %v44
    %v48 = vld [vmem:[%s1] sm:$0xf]
    %v49 = vld [vmem:[%s1 + $0x4] sm:$0xf]
    %v50 = vld [vmem:[%s1 + $0x8] sm:$0xf]
    %v51 = vld [vmem:[%s1 + $0xc] sm:$0xf]
    %v52 = vld [vmem:[%s1 + $0x10] sm:$0xf]
    %v53 = vld [vmem:[%s1 + $0x14] sm:$0xf]
    %v54 = vld [vmem:[%s1 + $0x18] sm:$0xf]
    %v55 = vld [vmem:[%s1 + $0x1c] sm:$0xf]
    %v56 = vld [vmem:[%s1 + $0x20] sm:$0xf]
    %v57 = vld [vmem:[%s1 + $0x24] sm:$0xf]
    %v58 = vld [vmem:[%s1 + $0x28] sm:$0xf]
    %v59 = vld [vmem:[%s1 + $0x2c] sm:$0xf]
    %v60 = vld [vmem:[%s1 + $0x30] sm:$0xf]
    %v61 = vld [vmem:[%s1 + $0x34] sm:$0xf]
    %v62 = vld [vmem:[%s1 + $0x38] sm:$0xf]
    %v63 = vld [vmem:[%s1 + $0x3c] sm:$0xf]
    %v80 = vunpack.c.l.b16 %v48
    %v81 = vunpack.c.l.b16 %v49
    %v82 = vunpack.c.l.b16 %v50
    %v83 = vunpack.c.l.b16 %v51
    %v84 = vunpack.c.l.b16 %v52
    %v85 = vunpack.c.l.b16 %v53
    %v86 = vunpack.c.l.b16 %v54
    %v87 = vunpack.c.l.b16 %v55
    %v88 = vunpack.c.l.b16 %v56
    %v89 = vunpack.c.l.b16 %v57
    %v90 = vunpack.c.l.b16 %v58
    %v91 = vunpack.c.l.b16 %v59
    %v92 = vunpack.c.l.b16 %v60
    %v93 = vunpack.c.l.b16 %v61
    %v94 = vunpack.c.l.b16 %v62
    %v95 = vunpack.c.l.b16 %v63
    %v96 = vpack.c.b16 %v81, %v80
    %v97 = vpack.c.b16 %v83, %v82
    %v98 = vpack.c.b16 %v85, %v84
    %v99 = vpack.c.b16 %v87, %v86
    %v100 = vpack.c.b16 %v89, %v88
    %v101 = vpack.c.b16 %v91, %v90
    %v102 = vpack.c.b16 %v93, %v92
    %v103 = vpack.c.b16 %v95, %v94
    %112 = vmatprep.subr.bf16.mxu0 0
    %113 = vmatpush1.bf16.msra.mxu0 %v96
    %114 = vmatprep.subr.bf16.mxu0 0
    %115 = vmatpush1.bf16.msra.mxu0 %v97
    %116 = vmatprep.subr.bf16.mxu0 0
    %117 = vmatpush1.bf16.msra.mxu0 %v98
    %118 = vmatprep.subr.bf16.mxu0 0
    %119 = vmatpush1.bf16.msra.mxu0 %v99
    %120 = vmatprep.subr.bf16.mxu0 0
    %121 = vmatpush1.bf16.msra.mxu0 %v100
    %122 = vmatprep.subr.bf16.mxu0 0
    %123 = vmatpush1.bf16.msra.mxu0 %v101
    %124 = vmatprep.subr.bf16.mxu0 0
    %125 = vmatpush1.bf16.msra.mxu0 %v102
    %126 = vmatprep.subr.bf16.mxu0 0
    %127 = vmatpush1.bf16.msra.mxu0 %v103
    %128 = vmatprep.subr.bf16.mxu0 0
    %129 = vmatpush1.bf16.msra.mxu0 0
    %130 = vmatprep.subr.bf16.mxu0 0
    %131 = vmatpush1.bf16.msra.mxu0 0
    %132 = vmatprep.subr.bf16.mxu0 0
    %133 = vmatpush1.bf16.msra.mxu0 0
    %134 = vmatprep.subr.bf16.mxu0 0
    %135 = vmatpush1.bf16.msra.mxu0 0
    %136 = vmatprep.subr.bf16.mxu0 0
    %137 = vmatpush1.bf16.msra.mxu0 0
    %138 = vmatprep.subr.bf16.mxu0 0
    %139 = vmatpush1.bf16.msra.mxu0 0
    %140 = vmatprep.subr.bf16.mxu0 0
    %141 = vmatpush1.bf16.msra.mxu0 0
    %142 = vmatprep.subr.bf16.mxu0 0
    %143 = vmatpush1.bf16.msra.mxu0 0
    %144 = vmatprep.mubr.bf16.mxu0 0
    %145 = vmatmul.mubr.bf16.gmra.mrb[0].mxu0 %v46
    %v146 = vpop.f32.mrb[0].mxu0
    %v147 = vadd.f32 0.0, %v146
    %v148 = vpop.f32.mrb[0].mxu0
    %v149 = vpop.f32.mrb[0].mxu0
    %v150 = vadd.f32 0.0, %v149
    %v151 = vpop.f32.mrb[0].mxu0
    %152 = vmatprep.mubr.bf16.mxu0 0
    %153 = vmatmul.mubr.bf16.gmra.mrb[0].mxu0 %v47
    %v154 = vpop.f32.mrb[0].mxu0
    %v155 = vadd.f32 0.0, %v154
    %v156 = vpop.f32.mrb[0].mxu0
    %v157 = vpop.f32.mrb[0].mxu0
    %v158 = vadd.f32 0.0, %v157
    %v159 = vpop.f32.mrb[0].mxu0
    %160 = vdwg.mxu0
    %v161 = vld [vmem:[%s2] sm:$0x1]
    %v163 = vlaneseq
    %v164 = vshrl.u32 %v163, 7
    %v165 = vsub.s32 0, %v164
    %v166 = vrot.slane %v161, %v165
    %v168 = vmul.f32 %v147, %v166
    %v169 = vmul.f32 %v150, %v166
    %v170 = vmul.f32 %v155, %v166
    %v171 = vmul.f32 %v158, %v166
    %v172 = vld [vmem:[%s3] sm:$0x1]
    %v174 = vlaneseq
    %v175 = vshrl.u32 %v174, 7
    %v176 = vsub.s32 0, %v175
    %v177 = vrot.slane %v172, %v176
    %v179 = vadd.f32 %v168, %v177
    %v180 = vadd.f32 %v169, %v177
    %v181 = vadd.f32 %v170, %v177
    %v182 = vadd.f32 %v171, %v177
    %v183 = vxor.u32 %v179, 2147483648
    %v184 = vxor.u32 %v180, 2147483648
    %v185 = vxor.u32 %v181, 2147483648
    %v186 = vxor.u32 %v182, 2147483648
    %v187 = vmul.f32 %v183, 1.442695
    %v188 = vpow.pop %v187
    %v189 = vmul.f32 %v184, 1.442695
    %v190 = vpow.pop %v189
    %v191 = vmul.f32 %v185, 1.442695
    %v192 = vpow.pop %v191
    %v193 = vmul.f32 %v186, 1.442695
    %v194 = vpow.pop %v193
    %v195 = vadd.f32 %v188, 1.0
    %v196 = vadd.f32 %v190, 1.0
    %v197 = vadd.f32 %v192, 1.0
    %v198 = vadd.f32 %v194, 1.0
    %v199 = vrcp.pop %v195
    %v200 = vmul.f32 1.0, %v199
    %v201 = vrcp.pop %v196
    %v202 = vmul.f32 1.0, %v201
    %v203 = vrcp.pop %v197
    %v204 = vmul.f32 1.0, %v203
    %v205 = vrcp.pop %v198
    %v206 = vmul.f32 1.0, %v205
    %v207 = vmul.f32 %v179, %v200
    %v208 = vmul.f32 %v180, %v202
    %v209 = vmul.f32 %v181, %v204
    %v210 = vmul.f32 %v182, %v206
    %v211 = vlaneseq
    %v212 = vshrl.u32 %v211, 7
    %v213 = vadd.s32 %v212, 8
    %v214 = vadd.s32 %v212, 16
    %v215 = vadd.s32 %v212, 24
    %vm216 = vcmp.lt.s32.totalorder %v212, 0
    %v217 = vsub.s32 0, %v212
    %v218 = vsel %vm216, %v217, %v212
    %v219 = vshrl.u32 %v218, 4
    %v220 = vand.u32 %v218, 15
    %v221 = vsub.s32 0, %v220
    %v222 = vsel %vm216, %v221, %v220
    %vm223 = vcmp.lt.s32.totalorder %v213, 0
    %v224 = vsub.s32 0, %v213
    %v225 = vsel %vm223, %v224, %v213
    %v226 = vshrl.u32 %v225, 4
    %v227 = vand.u32 %v225, 15
    %v228 = vsub.s32 0, %v227
    %v229 = vsel %vm223, %v228, %v227
    %vm230 = vcmp.lt.s32.totalorder %v214, 0
    %v231 = vsub.s32 0, %v214
    %v232 = vsel %vm230, %v231, %v214
    %v233 = vshrl.u32 %v232, 4
    %v234 = vand.u32 %v232, 15
    %v235 = vsub.s32 0, %v234
    %v236 = vsel %vm230, %v235, %v234
    %vm237 = vcmp.lt.s32.totalorder %v215, 0
    %v238 = vsub.s32 0, %v215
    %v239 = vsel %vm237, %v238, %v215
    %v240 = vshrl.u32 %v239, 4
    %v241 = vand.u32 %v239, 15
    %v242 = vsub.s32 0, %v241
    %v243 = vsel %vm237, %v242, %v241
    %vm244 = vcmp.ne.s32.totalorder %v222, 0
    %vm245 = vcmp.ne.s32.totalorder %v229, 0
    %vm246 = vcmp.ne.s32.totalorder %v236, 0
    %vm247 = vcmp.ne.s32.totalorder %v243, 0
    %vm248 = vcmp.lt.s32.totalorder %v222, 0
    %vm249 = vcmp.lt.s32.totalorder %v229, 0
    %vm250 = vcmp.lt.s32.totalorder %v236, 0
    %vm251 = vcmp.lt.s32.totalorder %v243, 0
    %vm252 = vmand %vm248, %vm244
    %vm253 = vmand %vm249, %vm245
    %vm254 = vmand %vm250, %vm246
    %vm255 = vmand %vm251, %vm247
    %v256 = vadd.s32 %v222, 16
    %v257 = vadd.s32 %v229, 16
    %v258 = vadd.s32 %v236, 16
    %v259 = vadd.s32 %v243, 16
    %v260 = vsel %vm252, %v256, %v222
    %v261 = vsel %vm253, %v257, %v229
    %v262 = vsel %vm254, %v258, %v236
    %v263 = vsel %vm255, %v259, %v243
    %v265 = vrot.slane %v210, 7
    %vm270 = vcmask 1040384
    %v271 = vrot.slane %v207, 7
    %v272 = vrot.slane %v208, 7
    %v273 = vsel %vm270, %v271, %v272
    %v274 = vrot.slane %v209, 7
    %v275 = vsel %vm270, %v272, %v274
    %v276 = vsel %vm270, %v274, %v265
    %v281 = vsel %vm270, %v265, %v271
    %v282 = vadd.s32 %v260, 4294967295
    %v283 = vadd.s32 %v261, 4294967295
    %v284 = vadd.s32 %v262, 4294967295
    %v285 = vadd.s32 %v263, 4294967295
    %vm286 = vcmp.ge.s32.totalorder %v282, 0
    %vm287 = vcmp.ge.s32.totalorder %v283, 0
    %vm288 = vcmp.ge.s32.totalorder %v284, 0
    %vm289 = vcmp.ge.s32.totalorder %v285, 0
    %vm290 = vcmp.lt.s32.totalorder %v282, 16
    %vm291 = vcmp.lt.s32.totalorder %v283, 16
    %vm292 = vcmp.lt.s32.totalorder %v284, 16
    %vm293 = vcmp.lt.s32.totalorder %v285, 16
    %vm294 = vmand %vm286, %vm290
    %vm295 = vmand %vm287, %vm291
    %vm296 = vmand %vm288, %vm292
    %vm297 = vmand %vm289, %vm293
    %v298 = vsel %vm294, %v281, 0.0
    %v299 = vsel %vm295, %v273, 0.0
    %v300 = vsel %vm296, %v275, 0.0
    %v301 = vsel %vm297, %v276, 0.0
    %vm302 = vcmask 1046528
    %v303 = vrot.slane %v207, 1
    %v304 = vrot.slane %v208, 1
    %v305 = vsel %vm302, %v303, %v304
    %v306 = vrot.slane %v209, 1
    %v307 = vsel %vm302, %v304, %v306
    %v308 = vrot.slane %v210, 1
    %v309 = vsel %vm302, %v306, %v308
    %v315 = vsel %vm302, %v308, %v303
    %v316 = vadd.s32 %v260, 1
    %v317 = vadd.s32 %v261, 1
    %v318 = vadd.s32 %v262, 1
    %v319 = vadd.s32 %v263, 1
    %vm320 = vcmp.ge.s32.totalorder %v316, 0
    %vm321 = vcmp.ge.s32.totalorder %v317, 0
    %vm322 = vcmp.ge.s32.totalorder %v318, 0
    %vm323 = vcmp.ge.s32.totalorder %v319, 0
    %vm324 = vcmp.lt.s32.totalorder %v316, 16
    %vm325 = vcmp.lt.s32.totalorder %v317, 16
    %vm326 = vcmp.lt.s32.totalorder %v318, 16
    %vm327 = vcmp.lt.s32.totalorder %v319, 16
    %vm328 = vmand %vm320, %vm324
    %vm329 = vmand %vm321, %vm325
    %vm330 = vmand %vm322, %vm326
    %vm331 = vmand %vm323, %vm327
    %v332 = vsel %vm328, %v305, 0.0
    %v333 = vsel %vm329, %v307, 0.0
    %v334 = vsel %vm330, %v309, 0.0
    %v335 = vsel %vm331, %v315, 0.0
    %336 = vrot.lane.b32.xlu0 %v207, 64
    %v337 = vpop.permute.xlu0 %336
    %338 = vrot.lane.b32.xlu0 %v208, 64
    %v339 = vpop.permute.xlu0 %338
    %340 = vrot.lane.b32.xlu0 %v209, 64
    %v341 = vpop.permute.xlu0 %340
    %342 = vrot.lane.b32.xlu0 %v210, 64
    %v343 = vpop.permute.xlu0 %342
    %vm348 = vcmask 523264
    %v349 = vsel %vm348, %v298, %v337
    %v350 = vsel %vm348, %v299, %v339
    %v351 = vsel %vm348, %v300, %v341
    %v352 = vsel %vm348, %v301, %v343
    %v353 = vpack.c.bf16 %v350, %v349
    %v354 = vpack.c.bf16 %v333, %v332
    %v355 = vpack.c.bf16 %v352, %v351
    %v356 = vpack.c.bf16 %v335, %v334
    %v357 = vld [vmem:[%s4] sm:$0xf]
    %v358 = vld [vmem:[%s4 + $0x4] sm:$0xf]
    %v359 = vld [vmem:[%s4 + $0x8] sm:$0xf]
    %v360 = vld [vmem:[%s4 + $0xc] sm:$0xf]
    %v361 = vld [vmem:[%s4 + $0x10] sm:$0xf]
    %v362 = vld [vmem:[%s4 + $0x14] sm:$0xf]
    %v363 = vld [vmem:[%s4 + $0x18] sm:$0xf]
    %v364 = vld [vmem:[%s4 + $0x1c] sm:$0xf]
    %v365 = vld [vmem:[%s4 + $0x20] sm:$0xf]
    %v366 = vld [vmem:[%s4 + $0x24] sm:$0xf]
    %v367 = vld [vmem:[%s4 + $0x28] sm:$0xf]
    %v368 = vld [vmem:[%s4 + $0x2c] sm:$0xf]
    %v369 = vld [vmem:[%s4 + $0x30] sm:$0xf]
    %v370 = vld [vmem:[%s4 + $0x34] sm:$0xf]
    %v371 = vld [vmem:[%s4 + $0x38] sm:$0xf]
    %v372 = vld [vmem:[%s4 + $0x3c] sm:$0xf]
    %v373 = vld [vmem:[%s4 + $0x40] sm:$0xf]
    %v374 = vld [vmem:[%s4 + $0x44] sm:$0xf]
    %v375 = vld [vmem:[%s4 + $0x48] sm:$0xf]
    %v376 = vld [vmem:[%s4 + $0x4c] sm:$0xf]
    %v377 = vld [vmem:[%s4 + $0x50] sm:$0xf]
    %v378 = vld [vmem:[%s4 + $0x54] sm:$0xf]
    %v379 = vld [vmem:[%s4 + $0x58] sm:$0xf]
    %v380 = vld [vmem:[%s4 + $0x5c] sm:$0xf]
    %v405 = vunpack.c.l.b16 %v357
    %v406 = vunpack.c.l.b16 %v358
    %v407 = vunpack.c.l.b16 %v359
    %v408 = vunpack.c.l.b16 %v360
    %v409 = vunpack.c.l.b16 %v361
    %v410 = vunpack.c.l.b16 %v362
    %v411 = vunpack.c.l.b16 %v363
    %v412 = vunpack.c.l.b16 %v364
    %v413 = vunpack.c.l.b16 %v365
    %v414 = vunpack.c.l.b16 %v366
    %v415 = vunpack.c.l.b16 %v367
    %v416 = vunpack.c.l.b16 %v368
    %v417 = vunpack.c.l.b16 %v369
    %v418 = vunpack.c.l.b16 %v370
    %v419 = vunpack.c.l.b16 %v371
    %v420 = vunpack.c.l.b16 %v372
    %v421 = vunpack.c.l.b16 %v373
    %v422 = vunpack.c.l.b16 %v374
    %v423 = vunpack.c.l.b16 %v375
    %v424 = vunpack.c.l.b16 %v376
    %v425 = vunpack.c.l.b16 %v377
    %v426 = vunpack.c.l.b16 %v378
    %v427 = vunpack.c.l.b16 %v379
    %v428 = vunpack.c.l.b16 %v380
    %v429 = vpack.c.b16 %v406, %v405
    %v430 = vpack.c.b16 %v408, %v407
    %v431 = vpack.c.b16 %v410, %v409
    %v432 = vpack.c.b16 %v412, %v411
    %v433 = vpack.c.b16 %v414, %v413
    %v434 = vpack.c.b16 %v416, %v415
    %v435 = vpack.c.b16 %v418, %v417
    %v436 = vpack.c.b16 %v420, %v419
    %v437 = vpack.c.b16 %v422, %v421
    %v438 = vpack.c.b16 %v424, %v423
    %v439 = vpack.c.b16 %v426, %v425
    %v440 = vpack.c.b16 %v428, %v427
    %v454 = vsel %vm348, %v354, 0
    %v457 = vsel %vm348, %v356, 0
    %459 = vmatprep.subr.bf16.mxu0 0
    %460 = vmatpush1.bf16.msra.mxu0 %v429
    %461 = vmatprep.subr.bf16.mxu0 0
    %462 = vmatpush1.bf16.msra.mxu0 %v430
    %463 = vmatprep.subr.bf16.mxu0 0
    %464 = vmatpush1.bf16.msra.mxu0 %v431
    %465 = vmatprep.subr.bf16.mxu0 0
    %466 = vmatpush1.bf16.msra.mxu0 %v432
    %467 = vmatprep.subr.bf16.mxu0 0
    %468 = vmatpush1.bf16.msra.mxu0 %v433
    %469 = vmatprep.subr.bf16.mxu0 0
    %470 = vmatpush1.bf16.msra.mxu0 %v434
    %471 = vmatprep.subr.bf16.mxu0 0
    %472 = vmatpush1.bf16.msra.mxu0 %v435
    %473 = vmatprep.subr.bf16.mxu0 0
    %474 = vmatpush1.bf16.msra.mxu0 %v436
    %475 = vmatprep.subr.bf16.mxu0 0
    %476 = vmatpush1.bf16.msra.mxu0 %v437
    %477 = vmatprep.subr.bf16.mxu0 0
    %478 = vmatpush1.bf16.msra.mxu0 %v438
    %479 = vmatprep.subr.bf16.mxu0 0
    %480 = vmatpush1.bf16.msra.mxu0 %v439
    %481 = vmatprep.subr.bf16.mxu0 0
    %482 = vmatpush1.bf16.msra.mxu0 %v440
    %483 = vmatprep.subr.bf16.mxu0 0
    %484 = vmatpush1.bf16.msra.mxu0 0
    %485 = vmatprep.subr.bf16.mxu0 0
    %486 = vmatpush1.bf16.msra.mxu0 0
    %487 = vmatprep.subr.bf16.mxu0 0
    %488 = vmatpush1.bf16.msra.mxu0 0
    %489 = vmatprep.subr.bf16.mxu0 0
    %490 = vmatpush1.bf16.msra.mxu0 0
    %491 = vmatprep.mubr.bf16.mxu0 %v454
    %492 = vmatmul.mubr.bf16.gmra.mrb[0].mxu0 %v353
    %v493 = vpop.f32.mrb[0].mxu0
    %v494 = vadd.f32 0.0, %v493
    %v495 = vpop.f32.mrb[0].mxu0
    %v496 = vpop.f32.mrb[0].mxu0
    %v497 = vadd.f32 0.0, %v496
    %v498 = vpop.f32.mrb[0].mxu0
    %499 = vmatprep.mubr.bf16.mxu0 %v457
    %500 = vmatmul.mubr.bf16.gmra.mrb[0].mxu0 %v355
    %v501 = vpop.f32.mrb[0].mxu0
    %v502 = vadd.f32 0.0, %v501
    %v503 = vpop.f32.mrb[0].mxu0
    %v504 = vpop.f32.mrb[0].mxu0
    %v505 = vadd.f32 0.0, %v504
    %v506 = vpop.f32.mrb[0].mxu0
    %507 = vdwg.mxu0
    %v508 = vld [vmem:[%s5] sm:$0x1]
    %v510 = vlaneseq
    %v511 = vshrl.u32 %v510, 7
    %v512 = vsub.s32 0, %v511
    %v513 = vrot.slane %v508, %v512
    %v515 = vmul.f32 %v494, %v513
    %v516 = vmul.f32 %v497, %v513
    %v517 = vmul.f32 %v502, %v513
    %v518 = vmul.f32 %v505, %v513
    %v519 = vld [vmem:[%s6] sm:$0x1]
    %v521 = vlaneseq
    %v522 = vshrl.u32 %v521, 7
    %v523 = vsub.s32 0, %v522
    %v524 = vrot.slane %v519, %v523
    %v526 = vadd.f32 %v515, %v524
    %v527 = vadd.f32 %v516, %v524
    %v528 = vadd.f32 %v517, %v524
    %v529 = vadd.f32 %v518, %v524
    %v530 = vxor.u32 %v526, 2147483648
    %v531 = vxor.u32 %v527, 2147483648
    %v532 = vxor.u32 %v528, 2147483648
    %v533 = vxor.u32 %v529, 2147483648
    %v534 = vmul.f32 %v530, 1.442695
    %v535 = vpow.pop %v534
    %v536 = vmul.f32 %v531, 1.442695
    %v537 = vpow.pop %v536
    %v538 = vmul.f32 %v532, 1.442695
    %v539 = vpow.pop %v538
    %v540 = vmul.f32 %v533, 1.442695
    %v541 = vpow.pop %v540
    %v542 = vadd.f32 %v535, 1.0
    %v543 = vadd.f32 %v537, 1.0
    %v544 = vadd.f32 %v539, 1.0
    %v545 = vadd.f32 %v541, 1.0
    %v546 = vrcp.pop %v542
    %v547 = vmul.f32 1.0, %v546
    %v548 = vrcp.pop %v543
    %v549 = vmul.f32 1.0, %v548
    %v550 = vrcp.pop %v544
    %v551 = vmul.f32 1.0, %v550
    %v552 = vrcp.pop %v545
    %v553 = vmul.f32 1.0, %v552
    %v554 = vmul.f32 %v526, %v547
    %v555 = vmul.f32 %v527, %v549
    %v556 = vmul.f32 %v528, %v551
    %v557 = vmul.f32 %v529, %v553
    %v558 = vadd.f32 %v554, %v42
    %v559 = vadd.f32 %v555, %v43
    %v560 = vadd.f32 %v556, %v44
    %v561 = vadd.f32 %v557, %v45
    %562 = vst [vmem:[#allocation5] sm:$0xff] %v558
    %563 = vst [vmem:[#allocation5 + $0x8] sm:$0xff] %v559
    %564 = vst [vmem:[#allocation5 + $0x10] sm:$0xff] %v560
    %565 = vst [vmem:[#allocation5 + $0x18] sm:$0xff] %v561
    // Predicated region
    $region34: #{tpu_custom_call.1} parent=1 // pred_check
      _
    $region35: #{tpu_custom_call.1} parent=1 // pred_check_branch
      %567 = sbr.rel (0) target = $region37
    $region36: #{tpu_custom_call.1} parent=1 // pred_region
      %s569 = ssub.s32 512, 512
      %570 = vsyncadd [#allocation4], %s569
      %s571 = sshll.u32 [#allocation5], 4
      %s572 = int_to_ptr.vmem [resolvable:$true] %s571
      %577 = dma.vmem_to_hbm [thread:$0]  %s572, 512, %s7, [#allocation4], 128, 128, 8
    $region37: #{tpu_custom_call.1} parent=1 // pred_fallthru
      _
    // Predicated region
    $region38: #{tpu_custom_call.1} parent=1 // pred_check
      _
    $region39: #{tpu_custom_call.1} parent=1 // pred_check_branch
      %579 = sbr.rel (0) target = $region41
    $region40: #{tpu_custom_call.1} parent=1 // pred_region
      %580 = dma.done [#allocation4], 512
    $region41: #{tpu_custom_call.1} parent=1 // pred_fallthru
      _
    %581 = vsyncpa [#allocation3], 1
    %582 = vsyncpa [#allocation4], 1

</llo_original>
